<compile_context>
chip_gen: v6e
topology: v6e:2x2x1
jax: 0.10.0
libtpu: 0.0.40
codegen_flags: <defaults>
</compile_context>

<pallas_src>
import functools

import jax
import jax.numpy as jnp
from jax import lax
from jax.experimental import pallas as pl
from jax.experimental.pallas import tpu as pltpu


def _round_up(x, m):
    return ((x + m - 1) // m) * m


def _vmem_cap_bytes():
    # 80% of the detected per-core VMEM (v5e/v6e: 128 MiB, v7x: 64 MiB) so
    # Mosaic keeps headroom for internal scratch / semaphores on v7x while
    # v5e/v6e are allowed well above the 64 MiB the previous version clamped to.
    try:
        cap = int(pltpu.get_tpu_info().vmem_capacity_bytes)
        if cap > 0:
            return int(0.8 * cap)
    except Exception:
        pass
    return 48 * 1024 * 1024   # conservative fallback (safe on v7x's 64 MiB)


def _vmem_limit(est_bytes):
    return int(min(max(2 * int(est_bytes), 32 * 1024 * 1024), _vmem_cap_bytes()))


# ---------------------------------------------------------------------------
# Kernel 1: hyperedge aggregation  E = H^T @ X   (+ se = E @ a[D:] at the end)
#   grid = (edge tiles [parallel], node tiles [reduction, last]).
#   bf16 MXU operands, f32 accumulation directly into the resident output
#   block (no scratch accumulator).  The node axis is contracted on dim 0 of
#   both operands so the DMA'd (nodes, edges) layout feeds the MXU without an
#   XLU transpose.
# ---------------------------------------------------------------------------
def edge_agg_kernel(h_ref, x_ref, ae_ref, e_ref, se_ref):
    @pl.when(pl.program_id(1) == 0)
    def _init():
        e_ref[...] = jnp.zeros_like(e_ref)

    e_ref[...] += lax.dot_general(
        h_ref[...], x_ref[...],
        dimension_numbers=(((0,), (0,)), ((), ())),   # contract the node axis
        preferred_element_type=jnp.float32,
    )

    @pl.when(pl.program_id(1) == pl.num_programs(1) - 1)
    def _finalize():
        # se = E @ a[D:] computed here (broadcast-multiply + lane reduction)
        # so E is not re-read from HBM by a separate XLA matvec.
        se_ref[...] = jnp.sum(e_ref[...] * ae_ref[...], axis=1, keepdims=True)


# ---------------------------------------------------------------------------
# Kernel 2: masked softmax aggregation, edge-tiled.
#   E_aug rows are pre-scaled by w_j = exp(se_j - c) and carry w_j in column
#   `d_col`, so a single bf16 mask-matmul produces numerator and denominator
#   at once (softmax shift-invariance: sx_i cancels).  grid = (node tiles
#   [parallel], edge tiles [reduction, last]); the f32 output block is the
#   accumulator, normalized once in the finalize branch.
# ---------------------------------------------------------------------------
def attention_kernel(m_ref, e_ref, o_ref, *, d_col):
    @pl.when(pl.program_id(1) == 0)
    def _init():
        o_ref[...] = jnp.zeros_like(o_ref)

    mask = (m_ref[...] != 0).astype(jnp.bfloat16)     # int8 {0,1} -> bf16 MXU
    o_ref[...] += jnp.dot(mask, e_ref[...], preferred_element_type=jnp.float32)

    @pl.when(pl.program_id(1) == pl.num_programs(1) - 1)
    def _finalize():
        acc = o_ref[...]
        denom = acc[:, d_col:d_col + 1] + 1e-16       # (tile_nodes, 1)
        o_ref[...] = acc * pl.reciprocal(denom, approx=False)


def hypergraph_attention(H, X, a, *, tile_nodes=512, tile_edges=512):
    """H: (N, M) dense incidence (zeros = absent sparse entries), X: (N, D),
    a: (2*D, 1).  Returns X_out: (N, D) in X's dtype."""
    N, M = H.shape
    Nx, D = X.shape
    assert Nx == N and a.shape == (2 * D, 1)
    out_dtype = X.dtype
    f32, bf16 = jnp.float32, jnp.bfloat16

    # --- TPU-friendly shapes.  D_pad reserves at least one spare lane
    # (column D) for the softmax denominator that rides inside kernel 2's
    # matmul output; lane dims are multiples of 128, row tiles of 32 (int8).
    D_pad = _round_up(D + 1, 128)
    tile_nodes = _round_up(min(tile_nodes, _round_up(N, 32)), 32)
    tile_edges = _round_up(min(tile_edges, _round_up(M, 128)), 128)
    N_pad = _round_up(N, tile_nodes)
    M_pad = _round_up(M, tile_edges)
    grid_n = N_pad // tile_nodes
    grid_m = M_pad // tile_edges

    # For a static hypergraph these casts/pads are one-time preprocessing.
    Hp32 = jnp.pad(H.astype(f32), ((0, N_pad - N), (0, M_pad - M)))
    Hp = Hp32.astype(bf16)                     # kernel-1 MXU operand
    mask = (Hp32 != 0).astype(jnp.int8)        # kernel-2 stream (4x < f32 H)
    Xp = jnp.pad(X.astype(f32), ((0, N_pad - N), (0, D_pad - D))).astype(bf16)
    a_e = jnp.pad(a[D:].astype(f32).reshape(1, D), ((0, 0), (0, D_pad - D)))

    # ---- kernel 1: E = H^T @ X  and  se = E @ a[D:] --------------------------
    vmem1 = 2 * (tile_nodes * tile_edges * 2       # H tile (bf16)
                 + tile_nodes * D_pad * 2          # X tile (bf16)
                 + D_pad * 4                       # a_e
                 + tile_edges * D_pad * 4          # E block (f32, resident)
                 + tile_edges * 128 * 4)           # se block (lane-padded)
    E, se = pl.pallas_call(
        edge_agg_kernel,
        out_shape=(jax.ShapeDtypeStruct((M_pad, D_pad), f32),
                   jax.ShapeDtypeStruct((M_pad, 1), f32)),
        grid=(grid_m, grid_n),
        in_specs=[
            pl.BlockSpec((tile_nodes, tile_edges), lambda j, k: (k, j)),  # H
            pl.BlockSpec((tile_nodes, D_pad), lambda j, k: (k, 0)),       # X
            pl.BlockSpec((1, D_pad), lambda j, k: (0, 0)),                # a_e
        ],
        out_specs=(
            pl.BlockSpec((tile_edges, D_pad), lambda j, k: (j, 0)),       # E
            pl.BlockSpec((tile_edges, 1), lambda j, k: (j, 0)),           # se
        ),
        compiler_params=pltpu.CompilerParams(
            dimension_semantics=("parallel", "arbitrary"),
            vmem_limit_bytes=_vmem_limit(vmem1),
        ),
    )(Hp, Xp, a_e)

    # Softmax over hyperedge scores.  logits_ij = sx_i + se_j; softmax is
    # invariant to the per-node constant sx_i, so it cancels exactly (the only
    # deviation is the reference's +1e-16 epsilon, now scaled by exp(-sx_i-c),
    # an O(1e-16) relative effect).  c >= max(se) keeps w <= 1 (no overflow);
    # zero-padded hyperedge rows get w > 0 but their mask columns are all zero.
    c = jnp.maximum(jnp.max(se), 0.0)
    w = jnp.exp(se - c)                                       # (M_pad, 1)
    # E_aug: columns [0, D) = w_j * E_j (numerator), column D = w_j (denom);
    # stored bf16 so kernel 2 runs the native bf16 MXU path.
    E_aug = (E * w).at[:, D].set(w[:, 0]).astype(bf16)        # (M_pad, D_pad)

    # ---- kernel 2: X_out = softmax-masked aggregation ------------------------
    vmem2 = 2 * (tile_nodes * tile_edges * 1       # int8 mask tile
                 + tile_nodes * tile_edges * 2     # in-kernel bf16 mask temp
                 + tile_edges * D_pad * 2          # E_aug tile (bf16)
                 + tile_nodes * D_pad * 4)         # f32 output block (resident)
    out = pl.pallas_call(
        functools.partial(attention_kernel, d_col=D),
        out_shape=jax.ShapeDtypeStruct((N_pad, D_pad), f32),
        grid=(grid_n, grid_m),
        in_specs=[
            pl.BlockSpec((tile_nodes, tile_edges), lambda i, k: (i, k)),  # mask
            pl.BlockSpec((tile_edges, D_pad), lambda i, k: (k, 0)),       # E_aug
        ],
        out_specs=pl.BlockSpec((tile_nodes, D_pad), lambda i, k: (i, 0)),
        compiler_params=pltpu.CompilerParams(
            dimension_semantics=("parallel", "arbitrary"),
            vmem_limit_bytes=_vmem_limit(vmem2),
        ),
    )(mask, E_aug)

    return out[:N, :D].astype(out_dtype)


if __name__ == "__main__":
    key = jax.random.PRNGKey(0)
    k1, k2, k3, k4 = jax.random.split(key, 4)

    # forward requires in_dim == out_dim (concat has 2*D cols, a has 2*D rows)
    N, M, D = 200, 160, 48   # non-multiples of the tile sizes (padding paths)

    # Sparse-ish incidence matrix (dense storage, zeros = missing entries).
    nz = jax.random.bernoulli(k1, p=0.1, shape=(N, M))
    vals = jax.random.uniform(k2, (N, M), minval=0.5, maxval=1.5)
    H = jnp.where(nz, vals, 0.0).astype(jnp.float32)
    H = H.at[5].set(0.0)          # a node with no incident hyperedges

    X = jax.random.normal(k3, (N, D), dtype=jnp.float32)

    # Deterministic xavier_uniform-style init for a: shape (2*D, 1)
    bound = (6.0 / (2 * D + 1)) ** 0.5
    a = jax.random.uniform(k4, (2 * D, 1), minval=-bound, maxval=bound,
                           dtype=jnp.float32)
    # NOTE: nn.Linear W (xavier init) and LeakyReLU(0.2) exist in __init__ but
    # are not used anywhere in forward, so they are intentionally omitted.

    HI = jax.lax.Precision.HIGHEST

    def reference_f32(H, X, a):
        # Dense-masked, full-f32 equivalent of the sparse torch forward.
        E = jnp.dot(H.T, X, precision=HI)
        logits = jnp.dot(X, a[:D], precision=HI) + jnp.dot(E, a[D:], precision=HI).T
        e_exp = jnp.where(H != 0.0, jnp.exp(logits), 0.0)
        denom = jnp.sum(e_exp, axis=1, keepdims=True) + 1e-16
        return jnp.dot(e_exp / denom, E, precision=HI)

    def reference_bf16_operands(H, X, a):
        # Mirrors the kernel's operand precision (bf16 MXU inputs, f32
        # accumulation, softmax shift-invariance) with plain XLA ops; this is
        # the tight structural check of tiling / indexing / reduction.
        bf, f32 = jnp.bfloat16, jnp.float32
        E = jnp.dot(H.astype(bf).T, X.astype(bf), preferred_element_type=f32)
        se = jnp.sum(E * a[D:].reshape(1, D), axis=1, keepdims=True)
        w = jnp.exp(se - jnp.maximum(jnp.max(se), 0.0))
        num_cols = (E * w).astype(bf).astype(f32)
        w_col = w.astype(bf).astype(f32)
        m = (H != 0.0).astype(f32)
        num = jnp.dot(m, num_cols, precision=HI)
        den = jnp.dot(m, w_col, precision=HI) + 1e-16
        return num / den

    ref_exact = reference_f32(H, X, a)
    ref_mirror = reference_bf16_operands(H, X, a)

    # Default (large) tiles -> single-step grids; small tiles -> multi-step
    # grids exercising the in-place output accumulators and padding paths.
    out_big = jax.block_until_ready(hypergraph_attention(H, X, a))
    out_small = jax.block_until_ready(
        hypergraph_attention(H, X, a, tile_nodes=64, tile_edges=128))

    for out in (out_big, out_small):
        assert out.shape == X.shape and out.dtype == X.dtype
        assert bool(jnp.all(jnp.isfinite(out)))
        # node 5 has no incident hyperedges -> exactly zero output row
        assert bool(jnp.all(out[5] == 0.0))
        # tight structural check vs the operand-precision-matched reference
        assert jnp.allclose(out, ref_mirror, atol=5e-3, rtol=5e-3)
        # sanity bound vs the exact f32 module reference: the bf16 MXU
        # operands (review item) keep the normalized max error well below 1%
        rel = jnp.max(jnp.abs(out - ref_exact)) / jnp.max(jnp.abs(ref_exact))
        assert float(rel) < 1e-2

    print("KERNEL_OK")
</pallas_src>

<mosaic_0001>
module attributes {stable_mosaic.version = 11 : i64} {
  func.func @edge_agg_kernel(%arg0: i32, %arg1: i32, %arg2: memref<224x256xbf16, #tpu.memory_space<vmem>>, %arg3: memref<224x128xbf16, #tpu.memory_space<vmem>>, %arg4: memref<1x128xf32, #tpu.memory_space<vmem>>, %arg5: memref<256x128xf32, #tpu.memory_space<vmem>>, %arg6: memref<256x1xf32, #tpu.memory_space<vmem>>) attributes {dimension_semantics = [#tpu.dimension_semantics<parallel>, #tpu.dimension_semantics<arbitrary>], iteration_bounds = array<i64: 1, 1>, scalar_prefetch = 0 : i64, scratch_operands = 0 : i64, tpu.core_type = #tpu.core_type<tc>, window_params = [{transform_indices = @transform_0, window_bounds = array<i64: 224, 256>}, {transform_indices = @transform_1, window_bounds = array<i64: 224, 128>}, {pipeline_mode = #tpu.pipeline_mode<synchronous>, transform_indices = @transform_2, window_bounds = array<i64: 1, 128>}, {transform_indices = @transform_3, window_bounds = array<i64: 256, 128>}, {transform_indices = @transform_4, window_bounds = array<i64: 256, 1>}]} {
    %c0_i32 = arith.constant 0 : i32
    %0 = arith.cmpi eq, %arg1, %c0_i32 : i32
    %1 = arith.extui %0 : i1 to i32
    %c0_i32_0 = arith.constant 0 : i32
    %2 = arith.cmpi ne, %1, %c0_i32_0 : i32
    scf.if %2 {
      %cst_10 = arith.constant 0.000000e+00 : f32
      %12 = vector.broadcast %cst_10 : f32 to vector<256x128xf32>
      %c0_11 = arith.constant 0 : index
      %c0_12 = arith.constant 0 : index
      %13 = vector.load %arg5[%c0_11, %c0_12] : memref<256x128xf32, #tpu.memory_space<vmem>>, vector<256x128xf32>
      tpu.vector_store %arg5[%c0_11, %c0_12], %12 {strides = array<i32>} : memref<256x128xf32, #tpu.memory_space<vmem>>, vector<256x128xf32>,
    } else {
    }
    %c0 = arith.constant 0 : index
    %c0_1 = arith.constant 0 : index
    %3 = vector.load %arg5[%c0, %c0_1] : memref<256x128xf32, #tpu.memory_space<vmem>>, vector<256x128xf32>
    %c0_2 = arith.constant 0 : index
    %c0_3 = arith.constant 0 : index
    %4 = vector.load %arg2[%c0_2, %c0_3] : memref<224x256xbf16, #tpu.memory_space<vmem>>, vector<224x256xbf16>
    %c0_4 = arith.constant 0 : index
    %c0_5 = arith.constant 0 : index
    %5 = vector.load %arg3[%c0_4, %c0_5] : memref<224x128xbf16, #tpu.memory_space<vmem>>, vector<224x128xbf16>
    %cst = arith.constant dense<0.000000e+00> : vector<256x128xf32>
    %6 = tpu.matmul %4, %5, %cst {dimension_numbers = #tpu.dot_dimension_numbers<[0], [0], [1], [1], [0, 1, 1, 1], [], []>} : vector<224x256xbf16>, vector<224x128xbf16>, vector<256x128xf32> -> vector<256x128xf32>
    %7 = arith.addf %3, %6 : vector<256x128xf32>
    %c0_6 = arith.constant 0 : index
    %c0_7 = arith.constant 0 : index
    %8 = vector.load %arg5[%c0_6, %c0_7] : memref<256x128xf32, #tpu.memory_space<vmem>>, vector<256x128xf32>
    tpu.vector_store %arg5[%c0_6, %c0_7], %7 {strides = array<i32>} : memref<256x128xf32, #tpu.memory_space<vmem>>, vector<256x128xf32>,
    %c0_i32_8 = arith.constant 0 : i32
    %9 = arith.cmpi eq, %arg1, %c0_i32_8 : i32
    %10 = arith.extui %9 : i1 to i32
    %c0_i32_9 = arith.constant 0 : i32
    %11 = arith.cmpi ne, %10, %c0_i32_9 : i32
    scf.if %11 {
      %c0_10 = arith.constant 0 : index
      %c0_11 = arith.constant 0 : index
      %12 = vector.load %arg5[%c0_10, %c0_11] : memref<256x128xf32, #tpu.memory_space<vmem>>, vector<256x128xf32>
      %c0_12 = arith.constant 0 : index
      %c0_13 = arith.constant 0 : index
      %13 = vector.load %arg4[%c0_12, %c0_13] : memref<1x128xf32, #tpu.memory_space<vmem>>, vector<1x128xf32>
      %14 = vector.broadcast %13 : vector<1x128xf32> to vector<256x128xf32>
      %15 = arith.mulf %12, %14 : vector<256x128xf32>
      %cst_14 = arith.constant dense<0.000000e+00> : vector<256xf32>
      %16 = vector.multi_reduction <add>, %15, %cst_14 [1] : vector<256x128xf32> to vector<256xf32>
      %17 = vector.shape_cast %16 : vector<256xf32> to vector<256x1xf32>
      %c0_15 = arith.constant 0 : index
      %c0_16 = arith.constant 0 : index
      %18 = vector.load %arg6[%c0_15, %c0_16] : memref<256x1xf32, #tpu.memory_space<vmem>>, vector<256x1xf32>
      tpu.vector_store %arg6[%c0_15, %c0_16], %17 {strides = array<i32>} : memref<256x1xf32, #tpu.memory_space<vmem>>, vector<256x1xf32>,
    } else {
    }
    return
  }
  func.func @transform_0(%arg0: i32, %arg1: i32) -> (i32, i32) {
    %c0_i32 = arith.constant 0 : i32
    return %arg1, %arg0 : i32, i32
  }
  func.func @transform_1(%arg0: i32, %arg1: i32) -> (i32, i32) {
    %c0_i32 = arith.constant 0 : i32
    %c0_i32_0 = arith.constant 0 : i32
    return %arg1, %c0_i32 : i32, i32
  }
  func.func @transform_2(%arg0: i32, %arg1: i32) -> (i32, i32) {
    %c0_i32 = arith.constant 0 : i32
    %c0_i32_0 = arith.constant 0 : i32
    %c0_i32_1 = arith.constant 0 : i32
    return %c0_i32, %c0_i32_0 : i32, i32
  }
  func.func @transform_3(%arg0: i32, %arg1: i32) -> (i32, i32) {
    %c0_i32 = arith.constant 0 : i32
    %c0_i32_0 = arith.constant 0 : i32
    return %arg0, %c0_i32 : i32, i32
  }
  func.func @transform_4(%arg0: i32, %arg1: i32) -> (i32, i32) {
    %c0_i32 = arith.constant 0 : i32
    %c0_i32_0 = arith.constant 0 : i32
    return %arg0, %c0_i32 : i32, i32
  }
}

</mosaic_0001>

<llo_original>
// kernel: tpu_custom_call.1
$region0: #{tpu_custom_call.1}
  #allocation0 [shape = 'u32[]', space=smem, size = 0x4, offset = 0x4, fixed_abs, tag = 'smem constant byte address 0x4 - core index']
  #allocation1 [shape = 'u32[144,128]{1,0:T(1,128)}', space=vmem, size = 0x12000, scoped, tag = 'internal scratch']
  %s0 = inlined_call_operand.hbm [shape: bf16[224,256], index: 0, kind: input, shape index: {}]
  %s1 = inlined_call_operand.hbm [shape: bf16[224,128], index: 1, kind: input, shape index: {}]
  %s2 = inlined_call_operand.vmem [shape: f32[1,128], index: 2, kind: input, shape index: {}]
  %s3 = inlined_call_operand.hbm [shape: f32[256,128], index: 3, kind: output, shape index: {0}]
  %s4 = inlined_call_operand.vmem [shape: f32[256,1], index: 4, kind: output, shape index: {1}]
  %5 = xla_tuple %s3, %s4
  %s6 = sld [smem:[#allocation0]]
  $region46: #{tpu_custom_call.1} parent=0
    _
  %s8 = ssub.s32 1, %s6
  %s9 = scalar_select 0, %s8, %s6
  $region1: #{tpu_custom_call.1} parent=0
    #allocation2 [shape = 'u8[114688]{0}', space=vmem, size = 0x1c000, scoped, tag = 'input window, operand 0, single buffered']
    #allocation3 [shape = 's32[1]{0}', space=sflag, size = 0x4, scoped, tag = 'scoped memory for tpu_custom_call.1']
    #allocation4 [shape = 's32[1]{0}', space=sflag, size = 0x4, scoped, tag = 'scoped memory for tpu_custom_call.1']
    #allocation5 [shape = 'u8[57344]{0}', space=vmem, size = 0xe000, scoped, tag = 'input window, operand 1, single buffered']
    #allocation6 [shape = 's32[1]{0}', space=sflag, size = 0x4, scoped, tag = 'scoped memory for tpu_custom_call.1']
    #allocation7 [shape = 'u8[131072]{0}', space=vmem, size = 0x20000, scoped, tag = 'output window, operand 0, single buffered']
    %10 = vsyncpa [#allocation3], 0
    %11 = vsyncpa [#allocation6], 0
    %12 = vsyncpa [#allocation4], 0
    // Predicated region
    $region2: #{tpu_custom_call.1} parent=1 // pred_check
      _
    $region3: #{tpu_custom_call.1} parent=1 // pred_check_branch
      %14 = sbr.rel (0) target = $region5
    $region4: #{tpu_custom_call.1} parent=1 // pred_region
      %s16 = ssub.s32 3584, 3584
      %17 = vsyncadd [#allocation3], %s16
      %s18 = sshll.u32 [#allocation2], 4
      %s19 = int_to_ptr.vmem [resolvable:$true] %s18
      %24 = dma.hbm_to_vmem [thread:$0]  %s0, 3584, %s19, [#allocation3], 128, 128, 8
    $region5: #{tpu_custom_call.1} parent=1 // pred_fallthru
      _
    // Predicated region
    $region6: #{tpu_custom_call.1} parent=1 // pred_check
      _
    $region7: #{tpu_custom_call.1} parent=1 // pred_check_branch
      %26 = sbr.rel (0) target = $region9
    $region8: #{tpu_custom_call.1} parent=1 // pred_region
      %s28 = ssub.s32 1792, 1792
      %29 = vsyncadd [#allocation6], %s28
      %s30 = sshll.u32 [#allocation5], 4
      %s31 = int_to_ptr.vmem [resolvable:$true] %s30
      %36 = dma.hbm_to_vmem [thread:$0]  %s1, 1792, %s31, [#allocation6], 64, 64, 4
    $region9: #{tpu_custom_call.1} parent=1 // pred_fallthru
      _
    // Predicated region
    $region10: #{tpu_custom_call.1} parent=1 // pred_check
      _
    $region11: #{tpu_custom_call.1} parent=1 // pred_check_branch
      %38 = sbr.rel (0) target = $region13
    $region12: #{tpu_custom_call.1} parent=1 // pred_region
      _
    $region13: #{tpu_custom_call.1} parent=1 // pred_fallthru
      _
    // Predicated region
    $region14: #{tpu_custom_call.1} parent=1 // pred_check
      _
    $region15: #{tpu_custom_call.1} parent=1 // pred_check_branch
      %40 = sbr.rel (0) target = $region17
    $region16: #{tpu_custom_call.1} parent=1 // pred_region
      %41 = dma.done [#allocation3], 3584
    $region17: #{tpu_custom_call.1} parent=1 // pred_fallthru
      _
    // Predicated region
    $region18: #{tpu_custom_call.1} parent=1 // pred_check
      _
    $region19: #{tpu_custom_call.1} parent=1 // pred_check_branch
      %43 = sbr.rel (0) target = $region21
    $region20: #{tpu_custom_call.1} parent=1 // pred_region
      %44 = dma.done [#allocation6], 1792
    $region21: #{tpu_custom_call.1} parent=1 // pred_fallthru
      _
    %p46 = scmp.eq.s32.totalorder 0, 0
    // Predicated region
    $region22: #{tpu_custom_call.1} parent=1 // pred_check
      %p47 = pneg %p46
    $region23: #{tpu_custom_call.1} parent=1 // pred_check_branch
      %49 = sbr.rel (%p47) target = $region25
    $region24: #{tpu_custom_call.1} parent=1 // pred_region
      %50 = vst [vmem:[#allocation7] sm:$0xff] 0.0
      %51 = vst [vmem:[#allocation7 + $0x8] sm:$0xff] 0.0
      %52 = vst [vmem:[#allocation7 + $0x10] sm:$0xff] 0.0
      %53 = vst [vmem:[#allocation7 + $0x18] sm:$0xff] 0.0
      %54 = vst [vmem:[#allocation7 + $0x20] sm:$0xff] 0.0
      %55 = vst [vmem:[#allocation7 + $0x28] sm:$0xff] 0.0
      %56 = vst [vmem:[#allocation7 + $0x30] sm:$0xff] 0.0
      %57 = vst [vmem:[#allocation7 + $0x38] sm:$0xff] 0.0
      %58 = vst [vmem:[#allocation7 + $0x40] sm:$0xff] 0.0
      %59 = vst [vmem:[#allocation7 + $0x48] sm:$0xff] 0.0
      %60 = vst [vmem:[#allocation7 + $0x50] sm:$0xff] 0.0
      %61 = vst [vmem:[#allocation7 + $0x58] sm:$0xff] 0.0
      %62 = vst [vmem:[#allocation7 + $0x60] sm:$0xff] 0.0
      %63 = vst [vmem:[#allocation7 + $0x68] sm:$0xff] 0.0
      %64 = vst [vmem:[#allocation7 + $0x70] sm:$0xff] 0.0
      %65 = vst [vmem:[#allocation7 + $0x78] sm:$0xff] 0.0
      %66 = vst [vmem:[#allocation7 + $0x80] sm:$0xff] 0.0
      %67 = vst [vmem:[#allocation7 + $0x88] sm:$0xff] 0.0
      %68 = vst [vmem:[#allocation7 + $0x90] sm:$0xff] 0.0
      %69 = vst [vmem:[#allocation7 + $0x98] sm:$0xff] 0.0
      %70 = vst [vmem:[#allocation7 + $0xa0] sm:$0xff] 0.0
      %71 = vst [vmem:[#allocation7 + $0xa8] sm:$0xff] 0.0
      %72 = vst [vmem:[#allocation7 + $0xb0] sm:$0xff] 0.0
      %73 = vst [vmem:[#allocation7 + $0xb8] sm:$0xff] 0.0
      %74 = vst [vmem:[#allocation7 + $0xc0] sm:$0xff] 0.0
      %75 = vst [vmem:[#allocation7 + $0xc8] sm:$0xff] 0.0
      %76 = vst [vmem:[#allocation7 + $0xd0] sm:$0xff] 0.0
      %77 = vst [vmem:[#allocation7 + $0xd8] sm:$0xff] 0.0
      %78 = vst [vmem:[#allocation7 + $0xe0] sm:$0xff] 0.0
      %79 = vst [vmem:[#allocation7 + $0xe8] sm:$0xff] 0.0
      %80 = vst [vmem:[#allocation7 + $0xf0] sm:$0xff] 0.0
      %81 = vst [vmem:[#allocation7 + $0xf8] sm:$0xff] 0.0
    $region25: #{tpu_custom_call.1} parent=1 // pred_fallthru
      _
    %v82 = vld [vmem:[#allocation7] sm:$0xff]
    %v83 = vld [vmem:[#allocation7 + $0x8] sm:$0xff]
    %v84 = vld [vmem:[#allocation7 + $0x10] sm:$0xff]
    %v85 = vld [vmem:[#allocation7 + $0x18] sm:$0xff]
    %v86 = vld [vmem:[#allocation7 + $0x20] sm:$0xff]
    %v87 = vld [vmem:[#allocation7 + $0x28] sm:$0xff]
    %v88 = vld [vmem:[#allocation7 + $0x30] sm:$0xff]
    %v89 = vld [vmem:[#allocation7 + $0x38] sm:$0xff]
    %v90 = vld [vmem:[#allocation7 + $0x40] sm:$0xff]
    %v91 = vld [vmem:[#allocation7 + $0x48] sm:$0xff]
    %v92 = vld [vmem:[#allocation7 + $0x50] sm:$0xff]
    %v93 = vld [vmem:[#allocation7 + $0x58] sm:$0xff]
    %v94 = vld [vmem:[#allocation7 + $0x60] sm:$0xff]
    %v95 = vld [vmem:[#allocation7 + $0x68] sm:$0xff]
    %v96 = vld [vmem:[#allocation7 + $0x70] sm:$0xff]
    %v97 = vld [vmem:[#allocation7 + $0x78] sm:$0xff]
    %v98 = vld [vmem:[#allocation7 + $0x80] sm:$0xff]
    %v99 = vld [vmem:[#allocation7 + $0x88] sm:$0xff]
    %v100 = vld [vmem:[#allocation7 + $0x90] sm:$0xff]
    %v101 = vld [vmem:[#allocation7 + $0x98] sm:$0xff]
    %v102 = vld [vmem:[#allocation7 + $0xa0] sm:$0xff]
    %v103 = vld [vmem:[#allocation7 + $0xa8] sm:$0xff]
    %v104 = vld [vmem:[#allocation7 + $0xb0] sm:$0xff]
    %v105 = vld [vmem:[#allocation7 + $0xb8] sm:$0xff]
    %v106 = vld [vmem:[#allocation7 + $0xc0] sm:$0xff]
    %v107 = vld [vmem:[#allocation7 + $0xc8] sm:$0xff]
    %v108 = vld [vmem:[#allocation7 + $0xd0] sm:$0xff]
    %v109 = vld [vmem:[#allocation7 + $0xd8] sm:$0xff]
    %v110 = vld [vmem:[#allocation7 + $0xe0] sm:$0xff]
    %v111 = vld [vmem:[#allocation7 + $0xe8] sm:$0xff]
    %v112 = vld [vmem:[#allocation7 + $0xf0] sm:$0xff]
    %v113 = vld [vmem:[#allocation7 + $0xf8] sm:$0xff]
    %v114 = vld [vmem:[#allocation2] sm:$0xff]
    %v115 = vld [vmem:[#allocation2 + $0x8] sm:$0xff]
    %v116 = vld [vmem:[#allocation2 + $0x10] sm:$0xff]
    %v117 = vld [vmem:[#allocation2 + $0x18] sm:$0xff]
    %v118 = vld [vmem:[#allocation2 + $0x20] sm:$0xff]
    %v119 = vld [vmem:[#allocation2 + $0x28] sm:$0xff]
    %v120 = vld [vmem:[#allocation2 + $0x30] sm:$0xff]
    %v121 = vld [vmem:[#allocation2 + $0x38] sm:$0xff]
    %v122 = vld [vmem:[#allocation2 + $0x40] sm:$0xff]
    %v123 = vld [vmem:[#allocation2 + $0x48] sm:$0xff]
    %v124 = vld [vmem:[#allocation2 + $0x50] sm:$0xff]
    %v125 = vld [vmem:[#allocation2 + $0x58] sm:$0xff]
    %v126 = vld [vmem:[#allocation2 + $0x60] sm:$0xff]
    %v127 = vld [vmem:[#allocation2 + $0x68] sm:$0xff]
    %v128 = vld [vmem:[#allocation2 + $0x70] sm:$0xff]
    %v129 = vld [vmem:[#allocation2 + $0x78] sm:$0xff]
    %v130 = vld [vmem:[#allocation2 + $0x80] sm:$0xff]
    %v131 = vld [vmem:[#allocation2 + $0x88] sm:$0xff]
    %v132 = vld [vmem:[#allocation2 + $0x90] sm:$0xff]
    %v133 = vld [vmem:[#allocation2 + $0x98] sm:$0xff]
    %v134 = vld [vmem:[#allocation2 + $0xa0] sm:$0xff]
    %v135 = vld [vmem:[#allocation2 + $0xa8] sm:$0xff]
    %v136 = vld [vmem:[#allocation2 + $0xb0] sm:$0xff]
    %v137 = vld [vmem:[#allocation2 + $0xb8] sm:$0xff]
    %v138 = vld [vmem:[#allocation2 + $0xc0] sm:$0xff]
    %v139 = vld [vmem:[#allocation2 + $0xc8] sm:$0xff]
    %v140 = vld [vmem:[#allocation2 + $0xd0] sm:$0xff]
    %v141 = vld [vmem:[#allocation2 + $0xd8] sm:$0xff]
    %v142 = vld [vmem:[#allocation5] sm:$0xf]
    %v143 = vld [vmem:[#allocation5 + $0x4] sm:$0xf]
    %v144 = vld [vmem:[#allocation5 + $0x8] sm:$0xf]
    %v145 = vld [vmem:[#allocation5 + $0xc] sm:$0xf]
    %v146 = vld [vmem:[#allocation5 + $0x10] sm:$0xf]
    %v147 = vld [vmem:[#allocation5 + $0x14] sm:$0xf]
    %v148 = vld [vmem:[#allocation5 + $0x18] sm:$0xf]
    %v149 = vld [vmem:[#allocation5 + $0x1c] sm:$0xf]
    %v150 = vld [vmem:[#allocation5 + $0x20] sm:$0xf]
    %v151 = vld [vmem:[#allocation5 + $0x24] sm:$0xf]
    %v152 = vld [vmem:[#allocation5 + $0x28] sm:$0xf]
    %v153 = vld [vmem:[#allocation5 + $0x2c] sm:$0xf]
    %v154 = vld [vmem:[#allocation5 + $0x30] sm:$0xf]
    %v155 = vld [vmem:[#allocation5 + $0x34] sm:$0xf]
    %v156 = vld [vmem:[#allocation5 + $0x38] sm:$0xf]
    %v157 = vld [vmem:[#allocation5 + $0x3c] sm:$0xf]
    %v158 = vld [vmem:[#allocation5 + $0x40] sm:$0xf]
    %v159 = vld [vmem:[#allocation5 + $0x44] sm:$0xf]
    %v160 = vld [vmem:[#allocation5 + $0x48] sm:$0xf]
    %v161 = vld [vmem:[#allocation5 + $0x4c] sm:$0xf]
    %v162 = vld [vmem:[#allocation5 + $0x50] sm:$0xf]
    %v163 = vld [vmem:[#allocation5 + $0x54] sm:$0xf]
    %v164 = vld [vmem:[#allocation5 + $0x58] sm:$0xf]
    %v165 = vld [vmem:[#allocation5 + $0x5c] sm:$0xf]
    %v166 = vld [vmem:[#allocation5 + $0x60] sm:$0xf]
    %v167 = vld [vmem:[#allocation5 + $0x64] sm:$0xf]
    %v168 = vld [vmem:[#allocation5 + $0x68] sm:$0xf]
    %v169 = vld [vmem:[#allocation5 + $0x6c] sm:$0xf]
    %v198 = vunpack.c.l.b16 %v114
    %v199 = vunpack.c.h.b16 %v114
    %v200 = vunpack.c.l.b16 %v115
    %v201 = vunpack.c.h.b16 %v115
    %v202 = vunpack.c.l.b16 %v116
    %v203 = vunpack.c.h.b16 %v116
    %v204 = vunpack.c.l.b16 %v117
    %v205 = vunpack.c.h.b16 %v117
    %v206 = vunpack.c.l.b16 %v118
    %v207 = vunpack.c.h.b16 %v118
    %v208 = vunpack.c.l.b16 %v119
    %v209 = vunpack.c.h.b16 %v119
    %v210 = vunpack.c.l.b16 %v120
    %v211 = vunpack.c.h.b16 %v120
    %v212 = vunpack.c.l.b16 %v121
    %v213 = vunpack.c.h.b16 %v121
    %v214 = vunpack.c.l.b16 %v122
    %v215 = vunpack.c.h.b16 %v122
    %v216 = vunpack.c.l.b16 %v123
    %v217 = vunpack.c.h.b16 %v123
    %v218 = vunpack.c.l.b16 %v124
    %v219 = vunpack.c.h.b16 %v124
    %v220 = vunpack.c.l.b16 %v125
    %v221 = vunpack.c.h.b16 %v125
    %v222 = vunpack.c.l.b16 %v126
    %v223 = vunpack.c.h.b16 %v126
    %v224 = vunpack.c.l.b16 %v127
    %v225 = vunpack.c.h.b16 %v127
    %v226 = vunpack.c.l.b16 %v128
    %v227 = vunpack.c.h.b16 %v128
    %v228 = vunpack.c.l.b16 %v129
    %v229 = vunpack.c.h.b16 %v129
    %v230 = vunpack.c.l.b16 %v130
    %v231 = vunpack.c.h.b16 %v130
    %v232 = vunpack.c.l.b16 %v131
    %v233 = vunpack.c.h.b16 %v131
    %v234 = vunpack.c.l.b16 %v132
    %v235 = vunpack.c.h.b16 %v132
    %v236 = vunpack.c.l.b16 %v133
    %v237 = vunpack.c.h.b16 %v133
    %v238 = vunpack.c.l.b16 %v134
    %v239 = vunpack.c.h.b16 %v134
    %v240 = vunpack.c.l.b16 %v135
    %v241 = vunpack.c.h.b16 %v135
    %v242 = vunpack.c.l.b16 %v136
    %v243 = vunpack.c.h.b16 %v136
    %v244 = vunpack.c.l.b16 %v137
    %v245 = vunpack.c.h.b16 %v137
    %v246 = vunpack.c.l.b16 %v138
    %v247 = vunpack.c.h.b16 %v138
    %v248 = vunpack.c.l.b16 %v139
    %v249 = vunpack.c.h.b16 %v139
    %v250 = vunpack.c.l.b16 %v140
    %v251 = vunpack.c.h.b16 %v140
    %v252 = vunpack.c.l.b16 %v141
    %v253 = vunpack.c.h.b16 %v141
    %v254 = vpack.c.b16 %v200, %v198
    %v255 = vpack.c.b16 %v201, %v199
    %v256 = vpack.c.b16 %v204, %v202
    %v257 = vpack.c.b16 %v205, %v203
    %v258 = vpack.c.b16 %v208, %v206
    %v259 = vpack.c.b16 %v209, %v207
    %v260 = vpack.c.b16 %v212, %v210
    %v261 = vpack.c.b16 %v213, %v211
    %v262 = vpack.c.b16 %v216, %v214
    %v263 = vpack.c.b16 %v217, %v215
    %v264 = vpack.c.b16 %v220, %v218
    %v265 = vpack.c.b16 %v221, %v219
    %v266 = vpack.c.b16 %v224, %v222
    %v267 = vpack.c.b16 %v225, %v223
    %v268 = vpack.c.b16 %v228, %v226
    %v269 = vpack.c.b16 %v229, %v227
    %v270 = vpack.c.b16 %v232, %v230
    %v271 = vpack.c.b16 %v233, %v231
    %v272 = vpack.c.b16 %v236, %v234
    %v273 = vpack.c.b16 %v237, %v235
    %v274 = vpack.c.b16 %v240, %v238
    %v275 = vpack.c.b16 %v241, %v239
    %v276 = vpack.c.b16 %v244, %v242
    %v277 = vpack.c.b16 %v245, %v243
    %v278 = vpack.c.b16 %v248, %v246
    %v279 = vpack.c.b16 %v249, %v247
    %v280 = vpack.c.b16 %v252, %v250
    %v281 = vpack.c.b16 %v253, %v251
    %310 = vxpose.xlu0.c.b16.start [1/8] %v254, 128
    %311 = vxpose.xlu0.c.b16.cont [2/8] %v256, 128
    %312 = vxpose.xlu0.c.b16.cont [3/8] %v258, 128
    %313 = vxpose.xlu0.c.b16.cont [4/8] %v260, 128
    %314 = vxpose.xlu0.c.b16.cont [5/8] %v262, 128
    %315 = vxpose.xlu0.c.b16.cont [6/8] %v264, 128
    %316 = vxpose.xlu0.c.b16.cont [7/8] %v266, 128
    %317 = vxpose.xlu0.c.b16.end [8/8] %v268, 128
    %v318 = vpop.trf.xlu0
    %v319 = vpop.trf.xlu0
    %v320 = vpop.trf.xlu0
    %v321 = vpop.trf.xlu0
    %v322 = vpop.trf.xlu0
    %v323 = vpop.trf.xlu0
    %v324 = vpop.trf.xlu0
    %v325 = vpop.trf.xlu0
    %326 = vxpose.xlu0.c.b16.start [1/8] %v255, 128
    %327 = vxpose.xlu0.c.b16.cont [2/8] %v257, 128
    %328 = vxpose.xlu0.c.b16.cont [3/8] %v259, 128
    %329 = vxpose.xlu0.c.b16.cont [4/8] %v261, 128
    %330 = vxpose.xlu0.c.b16.cont [5/8] %v263, 128
    %331 = vxpose.xlu0.c.b16.cont [6/8] %v265, 128
    %332 = vxpose.xlu0.c.b16.cont [7/8] %v267, 128
    %333 = vxpose.xlu0.c.b16.end [8/8] %v269, 128
    %v334 = vpop.trf.xlu0
    %v335 = vpop.trf.xlu0
    %v336 = vpop.trf.xlu0
    %v337 = vpop.trf.xlu0
    %v338 = vpop.trf.xlu0
    %v339 = vpop.trf.xlu0
    %v340 = vpop.trf.xlu0
    %v341 = vpop.trf.xlu0
    %342 = vxpose.xlu0.c.b16.start [1/8] %v270, 128
    %343 = vxpose.xlu0.c.b16.cont [2/8] %v272, 128
    %344 = vxpose.xlu0.c.b16.cont [3/8] %v274, 128
    %345 = vxpose.xlu0.c.b16.cont [4/8] %v276, 128
    %346 = vxpose.xlu0.c.b16.cont [5/8] %v278, 128
    %347 = vxpose.xlu0.c.b16.cont [6/8] %v280, 128
    %348 = vxpose.xlu0.c.b16.cont [7/8] 0, 128
    %349 = vxpose.xlu0.c.b16.end [8/8] 0, 128
    %v350 = vpop.trf.xlu0
    %v351 = vpop.trf.xlu0
    %v352 = vpop.trf.xlu0
    %v353 = vpop.trf.xlu0
    %v354 = vpop.trf.xlu0
    %v355 = vpop.trf.xlu0
    %v356 = vpop.trf.xlu0
    %v357 = vpop.trf.xlu0
    %358 = vxpose.xlu0.c.b16.start [1/8] %v271, 128
    %359 = vxpose.xlu0.c.b16.cont [2/8] %v273, 128
    %360 = vxpose.xlu0.c.b16.cont [3/8] %v275, 128
    %361 = vxpose.xlu0.c.b16.cont [4/8] %v277, 128
    %362 = vxpose.xlu0.c.b16.cont [5/8] %v279, 128
    %363 = vxpose.xlu0.c.b16.cont [6/8] %v281, 128
    %364 = vxpose.xlu0.c.b16.cont [7/8] 0, 128
    %365 = vxpose.xlu0.c.b16.end [8/8] 0, 128
    %v366 = vpop.trf.xlu0
    %v367 = vpop.trf.xlu0
    %v368 = vpop.trf.xlu0
    %v369 = vpop.trf.xlu0
    %v370 = vpop.trf.xlu0
    %v371 = vpop.trf.xlu0
    %v372 = vpop.trf.xlu0
    %v373 = vpop.trf.xlu0
    %v402 = vunpack.c.l.b16 %v142
    %v403 = vunpack.c.l.b16 %v143
    %v404 = vunpack.c.l.b16 %v144
    %v405 = vunpack.c.l.b16 %v145
    %v406 = vunpack.c.l.b16 %v146
    %v407 = vunpack.c.l.b16 %v147
    %v408 = vunpack.c.l.b16 %v148
    %v409 = vunpack.c.l.b16 %v149
    %v410 = vunpack.c.l.b16 %v150
    %v411 = vunpack.c.l.b16 %v151
    %v412 = vunpack.c.l.b16 %v152
    %v413 = vunpack.c.l.b16 %v153
    %v414 = vunpack.c.l.b16 %v154
    %v415 = vunpack.c.l.b16 %v155
    %v416 = vunpack.c.l.b16 %v156
    %v417 = vunpack.c.l.b16 %v157
    %v418 = vunpack.c.l.b16 %v158
    %v419 = vunpack.c.l.b16 %v159
    %v420 = vunpack.c.l.b16 %v160
    %v421 = vunpack.c.l.b16 %v161
    %v422 = vunpack.c.l.b16 %v162
    %v423 = vunpack.c.l.b16 %v163
    %v424 = vunpack.c.l.b16 %v164
    %v425 = vunpack.c.l.b16 %v165
    %v426 = vunpack.c.l.b16 %v166
    %v427 = vunpack.c.l.b16 %v167
    %v428 = vunpack.c.l.b16 %v168
    %v429 = vunpack.c.l.b16 %v169
    %v430 = vpack.c.b16 %v403, %v402
    %v431 = vpack.c.b16 %v405, %v404
    %v432 = vpack.c.b16 %v407, %v406
    %v433 = vpack.c.b16 %v409, %v408
    %v434 = vpack.c.b16 %v411, %v410
    %v435 = vpack.c.b16 %v413, %v412
    %v436 = vpack.c.b16 %v415, %v414
    %v437 = vpack.c.b16 %v417, %v416
    %v438 = vpack.c.b16 %v419, %v418
    %v439 = vpack.c.b16 %v421, %v420
    %v440 = vpack.c.b16 %v423, %v422
    %v441 = vpack.c.b16 %v425, %v424
    %v442 = vpack.c.b16 %v427, %v426
    %v443 = vpack.c.b16 %v429, %v428
    %vm458 = vcmask 785408
    %v460 = vsel %vm458, %v350, 0
    %v463 = vsel %vm458, %v351, 0
    %v466 = vsel %vm458, %v352, 0
    %v469 = vsel %vm458, %v353, 0
    %v472 = vsel %vm458, %v354, 0
    %v475 = vsel %vm458, %v355, 0
    %v478 = vsel %vm458, %v356, 0
    %v481 = vsel %vm458, %v357, 0
    %v484 = vsel %vm458, %v366, 0
    %v487 = vsel %vm458, %v367, 0
    %v490 = vsel %vm458, %v368, 0
    %v493 = vsel %vm458, %v369, 0
    %v496 = vsel %vm458, %v370, 0
    %v499 = vsel %vm458, %v371, 0
    %v502 = vsel %vm458, %v372, 0
    %v505 = vsel %vm458, %v373, 0
    %507 = vmatprep.subr.bf16.mxu0 0
    %508 = vmatpush1.bf16.msra.mxu0 %v437
    %509 = vmatprep.subr.bf16.mxu0 0
    %510 = vmatpush1.bf16.msra.mxu0 %v436
    %511 = vmatprep.subr.bf16.mxu0 0
    %512 = vmatpush1.bf16.msra.mxu0 %v435
    %513 = vmatprep.subr.bf16.mxu0 0
    %514 = vmatpush1.bf16.msra.mxu0 %v434
    %515 = vmatprep.subr.bf16.mxu0 0
    %516 = vmatpush1.bf16.msra.mxu0 %v433
    %517 = vmatprep.subr.bf16.mxu0 0
    %518 = vmatpush1.bf16.msra.mxu0 %v432
    %519 = vmatprep.subr.bf16.mxu0 0
    %520 = vmatpush1.bf16.msra.mxu0 %v431
    %521 = vmatprep.subr.bf16.mxu0 0
    %522 = vmatpush1.bf16.msra.mxu0 %v430
    %523 = vmatprep.subr.bf16.mxu0 0
    %524 = vmatpush2.bf16.msra.mxu0 0
    %525 = vmatprep.subr.bf16.mxu0 0
    %526 = vmatpush2.bf16.msra.mxu0 0
    %527 = vmatprep.subr.bf16.mxu0 0
    %528 = vmatpush2.bf16.msra.mxu0 %v443
    %529 = vmatprep.subr.bf16.mxu0 0
    %530 = vmatpush2.bf16.msra.mxu0 %v442
    %531 = vmatprep.subr.bf16.mxu0 0
    %532 = vmatpush2.bf16.msra.mxu0 %v441
    %533 = vmatprep.subr.bf16.mxu0 0
    %534 = vmatpush2.bf16.msra.mxu0 %v440
    %535 = vmatprep.subr.bf16.mxu0 0
    %536 = vmatpush2.bf16.msra.mxu0 %v439
    %537 = vmatprep.subr.bf16.mxu0 0
    %538 = vmatpush2.bf16.msra.mxu0 %v438
    %539 = vmatprep.mubr.bf16.mxu0 %v460
    %540 = vmatmul.mubr.bf16.gmra.mxu0 %v318
    %v541 = vpop.f32.mrf.mxu0
    %v542 = vadd.f32 0.0, %v541
    %v543 = vpop.f32.mrf.mxu0
    %v544 = vpop.f32.mrf.mxu0
    %v545 = vadd.f32 0.0, %v544
    %v546 = vpop.f32.mrf.mxu0
    %547 = vmatprep.mubr.bf16.mxu0 %v463
    %548 = vmatmul.mubr.bf16.gmra.mxu0 %v319
    %v549 = vpop.f32.mrf.mxu0
    %v550 = vadd.f32 0.0, %v549
    %v551 = vpop.f32.mrf.mxu0
    %v552 = vpop.f32.mrf.mxu0
    %v553 = vadd.f32 0.0, %v552
    %v554 = vpop.f32.mrf.mxu0
    %555 = vmatprep.mubr.bf16.mxu0 %v466
    %556 = vmatmul.mubr.bf16.gmra.mxu0 %v320
    %v557 = vpop.f32.mrf.mxu0
    %v558 = vadd.f32 0.0, %v557
    %v559 = vpop.f32.mrf.mxu0
    %v560 = vpop.f32.mrf.mxu0
    %v561 = vadd.f32 0.0, %v560
    %v562 = vpop.f32.mrf.mxu0
    %563 = vmatprep.mubr.bf16.mxu0 %v469
    %564 = vmatmul.mubr.bf16.gmra.mxu0 %v321
    %v565 = vpop.f32.mrf.mxu0
    %v566 = vadd.f32 0.0, %v565
    %v567 = vpop.f32.mrf.mxu0
    %v568 = vpop.f32.mrf.mxu0
    %v569 = vadd.f32 0.0, %v568
    %v570 = vpop.f32.mrf.mxu0
    %571 = vmatprep.mubr.bf16.mxu0 %v472
    %572 = vmatmul.mubr.bf16.gmra.mxu0 %v322
    %v573 = vpop.f32.mrf.mxu0
    %v574 = vadd.f32 0.0, %v573
    %v575 = vpop.f32.mrf.mxu0
    %v576 = vpop.f32.mrf.mxu0
    %v577 = vadd.f32 0.0, %v576
    %v578 = vpop.f32.mrf.mxu0
    %579 = vmatprep.mubr.bf16.mxu0 %v475
    %580 = vmatmul.mubr.bf16.gmra.mxu0 %v323
    %v581 = vpop.f32.mrf.mxu0
    %v582 = vadd.f32 0.0, %v581
    %v583 = vpop.f32.mrf.mxu0
    %v584 = vpop.f32.mrf.mxu0
    %v585 = vadd.f32 0.0, %v584
    %v586 = vpop.f32.mrf.mxu0
    %587 = vmatprep.mubr.bf16.mxu0 %v478
    %588 = vmatmul.mubr.bf16.gmra.mxu0 %v324
    %v589 = vpop.f32.mrf.mxu0
    %v590 = vadd.f32 0.0, %v589
    %v591 = vpop.f32.mrf.mxu0
    %v592 = vpop.f32.mrf.mxu0
    %v593 = vadd.f32 0.0, %v592
    %v594 = vpop.f32.mrf.mxu0
    %595 = vmatprep.mubr.bf16.mxu0 %v481
    %596 = vmatmul.mubr.bf16.gmra.mxu0 %v325
    %v597 = vpop.f32.mrf.mxu0
    %v598 = vadd.f32 0.0, %v597
    %v599 = vpop.f32.mrf.mxu0
    %v600 = vpop.f32.mrf.mxu0
    %v601 = vadd.f32 0.0, %v600
    %v602 = vpop.f32.mrf.mxu0
    %603 = vmatprep.mubr.bf16.mxu0 %v484
    %604 = vmatmul.mubr.bf16.gmra.mxu0 %v334
    %v605 = vpop.f32.mrf.mxu0
    %v606 = vadd.f32 0.0, %v605
    %v607 = vpop.f32.mrf.mxu0
    %v608 = vpop.f32.mrf.mxu0
    %v609 = vadd.f32 0.0, %v608
    %v610 = vpop.f32.mrf.mxu0
    %611 = vmatprep.mubr.bf16.mxu0 %v487
    %612 = vmatmul.mubr.bf16.gmra.mxu0 %v335
    %v613 = vpop.f32.mrf.mxu0
    %v614 = vadd.f32 0.0, %v613
    %v615 = vpop.f32.mrf.mxu0
    %v616 = vpop.f32.mrf.mxu0
    %v617 = vadd.f32 0.0, %v616
    %v618 = vpop.f32.mrf.mxu0
    %619 = vmatprep.mubr.bf16.mxu0 %v490
    %620 = vmatmul.mubr.bf16.gmra.mxu0 %v336
    %v621 = vpop.f32.mrf.mxu0
    %v622 = vadd.f32 0.0, %v621
    %v623 = vpop.f32.mrf.mxu0
    %v624 = vpop.f32.mrf.mxu0
    %v625 = vadd.f32 0.0, %v624
    %v626 = vpop.f32.mrf.mxu0
    %627 = vmatprep.mubr.bf16.mxu0 %v493
    %628 = vmatmul.mubr.bf16.gmra.mxu0 %v337
    %v629 = vpop.f32.mrf.mxu0
    %v630 = vadd.f32 0.0, %v629
    %v631 = vpop.f32.mrf.mxu0
    %v632 = vpop.f32.mrf.mxu0
    %v633 = vadd.f32 0.0, %v632
    %v634 = vpop.f32.mrf.mxu0
    %635 = vmatprep.mubr.bf16.mxu0 %v496
    %636 = vmatmul.mubr.bf16.gmra.mxu0 %v338
    %v637 = vpop.f32.mrf.mxu0
    %v638 = vadd.f32 0.0, %v637
    %v639 = vpop.f32.mrf.mxu0
    %v640 = vpop.f32.mrf.mxu0
    %v641 = vadd.f32 0.0, %v640
    %v642 = vpop.f32.mrf.mxu0
    %643 = vmatprep.mubr.bf16.mxu0 %v499
    %644 = vmatmul.mubr.bf16.gmra.mxu0 %v339
    %v645 = vpop.f32.mrf.mxu0
    %v646 = vadd.f32 0.0, %v645
    %v647 = vpop.f32.mrf.mxu0
    %v648 = vpop.f32.mrf.mxu0
    %v649 = vadd.f32 0.0, %v648
    %v650 = vpop.f32.mrf.mxu0
    %651 = vmatprep.mubr.bf16.mxu0 %v502
    %652 = vmatmul.mubr.bf16.gmra.mxu0 %v340
    %v653 = vpop.f32.mrf.mxu0
    %v654 = vadd.f32 0.0, %v653
    %v655 = vpop.f32.mrf.mxu0
    %v656 = vpop.f32.mrf.mxu0
    %v657 = vadd.f32 0.0, %v656
    %v658 = vpop.f32.mrf.mxu0
    %659 = vmatprep.mubr.bf16.mxu0 %v505
    %660 = vmatmul.mubr.bf16.gmra.mxu0 %v341
    %v661 = vpop.f32.mrf.mxu0
    %v662 = vadd.f32 0.0, %v661
    %v663 = vpop.f32.mrf.mxu0
    %v664 = vpop.f32.mrf.mxu0
    %v665 = vadd.f32 0.0, %v664
    %v666 = vpop.f32.mrf.mxu0
    %667 = vdwg.mxu0
    %v668 = vadd.f32 %v82, %v542
    %v669 = vadd.f32 %v83, %v545
    %v670 = vadd.f32 %v84, %v550
    %v671 = vadd.f32 %v85, %v553
    %v672 = vadd.f32 %v86, %v558
    %v673 = vadd.f32 %v87, %v561
    %v674 = vadd.f32 %v88, %v566
    %v675 = vadd.f32 %v89, %v569
    %v676 = vadd.f32 %v90, %v574
    %v677 = vadd.f32 %v91, %v577
    %v678 = vadd.f32 %v92, %v582
    %v679 = vadd.f32 %v93, %v585
    %v680 = vadd.f32 %v94, %v590
    %v681 = vadd.f32 %v95, %v593
    %v682 = vadd.f32 %v96, %v598
    %v683 = vadd.f32 %v97, %v601
    %v684 = vadd.f32 %v98, %v606
    %v685 = vadd.f32 %v99, %v609
    %v686 = vadd.f32 %v100, %v614
    %v687 = vadd.f32 %v101, %v617
    %v688 = vadd.f32 %v102, %v622
    %v689 = vadd.f32 %v103, %v625
    %v690 = vadd.f32 %v104, %v630
    %v691 = vadd.f32 %v105, %v633
    %v692 = vadd.f32 %v106, %v638
    %v693 = vadd.f32 %v107, %v641
    %v694 = vadd.f32 %v108, %v646
    %v695 = vadd.f32 %v109, %v649
    %v696 = vadd.f32 %v110, %v654
    %v697 = vadd.f32 %v111, %v657
    %v698 = vadd.f32 %v112, %v662
    %v699 = vadd.f32 %v113, %v665
    %700 = vst [vmem:[#allocation7] sm:$0xff] %v668
    %701 = vst [vmem:[#allocation7 + $0x8] sm:$0xff] %v669
    %702 = vst [vmem:[#allocation7 + $0x10] sm:$0xff] %v670
    %703 = vst [vmem:[#allocation7 + $0x18] sm:$0xff] %v671
    %704 = vst [vmem:[#allocation7 + $0x20] sm:$0xff] %v672
    %705 = vst [vmem:[#allocation7 + $0x28] sm:$0xff] %v673
    %706 = vst [vmem:[#allocation7 + $0x30] sm:$0xff] %v674
    %707 = vst [vmem:[#allocation7 + $0x38] sm:$0xff] %v675
    %708 = vst [vmem:[#allocation7 + $0x40] sm:$0xff] %v676
    %709 = vst [vmem:[#allocation7 + $0x48] sm:$0xff] %v677
    %710 = vst [vmem:[#allocation7 + $0x50] sm:$0xff] %v678
    %711 = vst [vmem:[#allocation7 + $0x58] sm:$0xff] %v679
    %712 = vst [vmem:[#allocation7 + $0x60] sm:$0xff] %v680
    %713 = vst [vmem:[#allocation7 + $0x68] sm:$0xff] %v681
    %714 = vst [vmem:[#allocation7 + $0x70] sm:$0xff] %v682
    %715 = vst [vmem:[#allocation7 + $0x78] sm:$0xff] %v683
    %716 = vst [vmem:[#allocation7 + $0x80] sm:$0xff] %v684
    %717 = vst [vmem:[#allocation7 + $0x88] sm:$0xff] %v685
    %718 = vst [vmem:[#allocation7 + $0x90] sm:$0xff] %v686
    %719 = vst [vmem:[#allocation7 + $0x98] sm:$0xff] %v687
    %720 = vst [vmem:[#allocation7 + $0xa0] sm:$0xff] %v688
    %721 = vst [vmem:[#allocation7 + $0xa8] sm:$0xff] %v689
    %722 = vst [vmem:[#allocation7 + $0xb0] sm:$0xff] %v690
    %723 = vst [vmem:[#allocation7 + $0xb8] sm:$0xff] %v691
    %724 = vst [vmem:[#allocation7 + $0xc0] sm:$0xff] %v692
    %725 = vst [vmem:[#allocation7 + $0xc8] sm:$0xff] %v693
    %726 = vst [vmem:[#allocation7 + $0xd0] sm:$0xff] %v694
    %727 = vst [vmem:[#allocation7 + $0xd8] sm:$0xff] %v695
    %728 = vst [vmem:[#allocation7 + $0xe0] sm:$0xff] %v696
    %729 = vst [vmem:[#allocation7 + $0xe8] sm:$0xff] %v697
    %730 = vst [vmem:[#allocation7 + $0xf0] sm:$0xff] %v698
    %731 = vst [vmem:[#allocation7 + $0xf8] sm:$0xff] %v699
    // Predicated region
    $region26: #{tpu_custom_call.1} parent=1 // pred_check
      %p732 = pneg %p46
    $region27: #{tpu_custom_call.1} parent=1 // pred_check_branch
      %734 = sbr.rel (%p732) target = $region29
    $region28: #{tpu_custom_call.1} parent=1 // pred_region
      %v735 = vld [vmem:[#allocation7] sm:$0xff]
      %v736 = vld [vmem:[#allocation7 + $0x8] sm:$0xff]
      %v737 = vld [vmem:[#allocation7 + $0x10] sm:$0xff]
      %v738 = vld [vmem:[#allocation7 + $0x18] sm:$0xff]
      %v739 = vld [vmem:[#allocation7 + $0x20] sm:$0xff]
      %v740 = vld [vmem:[#allocation7 + $0x28] sm:$0xff]
      %v741 = vld [vmem:[#allocation7 + $0x30] sm:$0xff]
      %v742 = vld [vmem:[#allocation7 + $0x38] sm:$0xff]
      %v743 = vld [vmem:[#allocation7 + $0x40] sm:$0xff]
      %v744 = vld [vmem:[#allocation7 + $0x48] sm:$0xff]
      %v745 = vld [vmem:[#allocation7 + $0x50] sm:$0xff]
      %v746 = vld [vmem:[#allocation7 + $0x58] sm:$0xff]
      %v747 = vld [vmem:[#allocation7 + $0x60] sm:$0xff]
      %v748 = vld [vmem:[#allocation7 + $0x68] sm:$0xff]
      %v749 = vld [vmem:[#allocation7 + $0x70] sm:$0xff]
      %v750 = vld [vmem:[#allocation7 + $0x78] sm:$0xff]
      %v751 = vld [vmem:[#allocation7 + $0x80] sm:$0xff]
      %v752 = vld [vmem:[#allocation7 + $0x88] sm:$0xff]
      %v753 = vld [vmem:[#allocation7 + $0x90] sm:$0xff]
      %v754 = vld [vmem:[#allocation7 + $0x98] sm:$0xff]
      %v755 = vld [vmem:[#allocation7 + $0xa0] sm:$0xff]
      %v756 = vld [vmem:[#allocation7 + $0xa8] sm:$0xff]
      %v757 = vld [vmem:[#allocation7 + $0xb0] sm:$0xff]
      %v758 = vld [vmem:[#allocation7 + $0xb8] sm:$0xff]
      %v759 = vld [vmem:[#allocation7 + $0xc0] sm:$0xff]
      %v760 = vld [vmem:[#allocation7 + $0xc8] sm:$0xff]
      %v761 = vld [vmem:[#allocation7 + $0xd0] sm:$0xff]
      %v762 = vld [vmem:[#allocation7 + $0xd8] sm:$0xff]
      %v763 = vld [vmem:[#allocation7 + $0xe0] sm:$0xff]
      %v764 = vld [vmem:[#allocation7 + $0xe8] sm:$0xff]
      %v765 = vld [vmem:[#allocation7 + $0xf0] sm:$0xff]
      %v766 = vld [vmem:[#allocation7 + $0xf8] sm:$0xff]
      %v767 = vld [vmem:[%s2] sm:$0x1]
      %v769 = vlaneseq
      %v770 = vshrl.u32 %v769, 7
      %v771 = vsub.s32 0, %v770
      %v772 = vrot.slane %v767, %v771
      %v774 = vmul.f32 %v735, %v772
      %v775 = vmul.f32 %v736, %v772
      %v776 = vmul.f32 %v737, %v772
      %v777 = vmul.f32 %v738, %v772
      %v778 = vmul.f32 %v739, %v772
      %v779 = vmul.f32 %v740, %v772
      %v780 = vmul.f32 %v741, %v772
      %v781 = vmul.f32 %v742, %v772
      %v782 = vmul.f32 %v743, %v772
      %v783 = vmul.f32 %v744, %v772
      %v784 = vmul.f32 %v745, %v772
      %v785 = vmul.f32 %v746, %v772
      %v786 = vmul.f32 %v747, %v772
      %v787 = vmul.f32 %v748, %v772
      %v788 = vmul.f32 %v749, %v772
      %v789 = vmul.f32 %v750, %v772
      %v790 = vmul.f32 %v751, %v772
      %v791 = vmul.f32 %v752, %v772
      %v792 = vmul.f32 %v753, %v772
      %v793 = vmul.f32 %v754, %v772
      %v794 = vmul.f32 %v755, %v772
      %v795 = vmul.f32 %v756, %v772
      %v796 = vmul.f32 %v757, %v772
      %v797 = vmul.f32 %v758, %v772
      %v798 = vmul.f32 %v759, %v772
      %v799 = vmul.f32 %v760, %v772
      %v800 = vmul.f32 %v761, %v772
      %v801 = vmul.f32 %v762, %v772
      %v802 = vmul.f32 %v763, %v772
      %v803 = vmul.f32 %v764, %v772
      %v804 = vmul.f32 %v765, %v772
      %v805 = vmul.f32 %v766, %v772
      %806 = vadd.xlane.f32.xlu0 %v774
      %v807 = vpop.xlane.xlu0 %806
      %808 = vadd.xlane.f32.xlu0 %v775
      %v809 = vpop.xlane.xlu0 %808
      %810 = vadd.xlane.f32.xlu0 %v776
      %v811 = vpop.xlane.xlu0 %810
      %812 = vadd.xlane.f32.xlu0 %v777
      %v813 = vpop.xlane.xlu0 %812
      %814 = vadd.xlane.f32.xlu0 %v778
      %v815 = vpop.xlane.xlu0 %814
      %816 = vadd.xlane.f32.xlu0 %v779
      %v817 = vpop.xlane.xlu0 %816
      %818 = vadd.xlane.f32.xlu0 %v780
      %v819 = vpop.xlane.xlu0 %818
      %820 = vadd.xlane.f32.xlu0 %v781
      %v821 = vpop.xlane.xlu0 %820
      %822 = vadd.xlane.f32.xlu0 %v782
      %v823 = vpop.xlane.xlu0 %822
      %824 = vadd.xlane.f32.xlu0 %v783
      %v825 = vpop.xlane.xlu0 %824
      %826 = vadd.xlane.f32.xlu0 %v784
      %v827 = vpop.xlane.xlu0 %826
      %828 = vadd.xlane.f32.xlu0 %v785
      %v829 = vpop.xlane.xlu0 %828
      %830 = vadd.xlane.f32.xlu0 %v786
      %v831 = vpop.xlane.xlu0 %830
      %832 = vadd.xlane.f32.xlu0 %v787
      %v833 = vpop.xlane.xlu0 %832
      %834 = vadd.xlane.f32.xlu0 %v788
      %v835 = vpop.xlane.xlu0 %834
      %836 = vadd.xlane.f32.xlu0 %v789
      %v837 = vpop.xlane.xlu0 %836
      %838 = vadd.xlane.f32.xlu0 %v790
      %v839 = vpop.xlane.xlu0 %838
      %840 = vadd.xlane.f32.xlu0 %v791
      %v841 = vpop.xlane.xlu0 %840
      %842 = vadd.xlane.f32.xlu0 %v792
      %v843 = vpop.xlane.xlu0 %842
      %844 = vadd.xlane.f32.xlu0 %v793
      %v845 = vpop.xlane.xlu0 %844
      %846 = vadd.xlane.f32.xlu0 %v794
      %v847 = vpop.xlane.xlu0 %846
      %848 = vadd.xlane.f32.xlu0 %v795
      %v849 = vpop.xlane.xlu0 %848
      %850 = vadd.xlane.f32.xlu0 %v796
      %v851 = vpop.xlane.xlu0 %850
      %852 = vadd.xlane.f32.xlu0 %v797
      %v853 = vpop.xlane.xlu0 %852
      %854 = vadd.xlane.f32.xlu0 %v798
      %v855 = vpop.xlane.xlu0 %854
      %856 = vadd.xlane.f32.xlu0 %v799
      %v857 = vpop.xlane.xlu0 %856
      %858 = vadd.xlane.f32.xlu0 %v800
      %v859 = vpop.xlane.xlu0 %858
      %860 = vadd.xlane.f32.xlu0 %v801
      %v861 = vpop.xlane.xlu0 %860
      %862 = vadd.xlane.f32.xlu0 %v802
      %v863 = vpop.xlane.xlu0 %862
      %864 = vadd.xlane.f32.xlu0 %v803
      %v865 = vpop.xlane.xlu0 %864
      %866 = vadd.xlane.f32.xlu0 %v804
      %v867 = vpop.xlane.xlu0 %866
      %868 = vadd.xlane.f32.xlu0 %v805
      %v869 = vpop.xlane.xlu0 %868
      %vm870 = vcmask 7168
      %871 = vst.msk [vmem:[%s4] sm:$0xff] %vm870, %v807
      %872 = vst.msk [vmem:[%s4 + $0x8] sm:$0xff] %vm870, %v809
      %873 = vst.msk [vmem:[%s4 + $0x10] sm:$0xff] %vm870, %v811
      %874 = vst.msk [vmem:[%s4 + $0x18] sm:$0xff] %vm870, %v813
      %875 = vst.msk [vmem:[%s4 + $0x20] sm:$0xff] %vm870, %v815
      %876 = vst.msk [vmem:[%s4 + $0x28] sm:$0xff] %vm870, %v817
      %877 = vst.msk [vmem:[%s4 + $0x30] sm:$0xff] %vm870, %v819
      %878 = vst.msk [vmem:[%s4 + $0x38] sm:$0xff] %vm870, %v821
      %879 = vst.msk [vmem:[%s4 + $0x40] sm:$0xff] %vm870, %v823
      %880 = vst.msk [vmem:[%s4 + $0x48] sm:$0xff] %vm870, %v825
      %881 = vst.msk [vmem:[%s4 + $0x50] sm:$0xff] %vm870, %v827
      %882 = vst.msk [vmem:[%s4 + $0x58] sm:$0xff] %vm870, %v829
      %883 = vst.msk [vmem:[%s4 + $0x60] sm:$0xff] %vm870, %v831
      %884 = vst.msk [vmem:[%s4 + $0x68] sm:$0xff] %vm870, %v833
      %885 = vst.msk [vmem:[%s4 + $0x70] sm:$0xff] %vm870, %v835
      %886 = vst.msk [vmem:[%s4 + $0x78] sm:$0xff] %vm870, %v837
      %887 = vst.msk [vmem:[%s4 + $0x80] sm:$0xff] %vm870, %v839
      %888 = vst.msk [vmem:[%s4 + $0x88] sm:$0xff] %vm870, %v841
      %889 = vst.msk [vmem:[%s4 + $0x90] sm:$0xff] %vm870, %v843
      %890 = vst.msk [vmem:[%s4 + $0x98] sm:$0xff] %vm870, %v845
      %891 = vst.msk [vmem:[%s4 + $0xa0] sm:$0xff] %vm870, %v847
      %892 = vst.msk [vmem:[%s4 + $0xa8] sm:$0xff] %vm870, %v849
      %893 = vst.msk [vmem:[%s4 + $0xb0] sm:$0xff] %vm870, %v851
      %894 = vst.msk [vmem:[%s4 + $0xb8] sm:$0xff] %vm870, %v853
      %895 = vst.msk [vmem:[%s4 + $0xc0] sm:$0xff] %vm870, %v855
      %896 = vst.msk [vmem:[%s4 + $0xc8] sm:$0xff] %vm870, %v857
      %897 = vst.msk [vmem:[%s4 + $0xd0] sm:$0xff] %vm870, %v859
      %898 = vst.msk [vmem:[%s4 + $0xd8] sm:$0xff] %vm870, %v861
      %899 = vst.msk [vmem:[%s4 + $0xe0] sm:$0xff] %vm870, %v863
      %900 = vst.msk [vmem:[%s4 + $0xe8] sm:$0xff] %vm870, %v865
      %901 = vst.msk [vmem:[%s4 + $0xf0] sm:$0xff] %vm870, %v867
      %902 = vst.msk [vmem:[%s4 + $0xf8] sm:$0xff] %vm870, %v869
    $region29: #{tpu_custom_call.1} parent=1 // pred_fallthru
      _
    // Predicated region
    $region30: #{tpu_custom_call.1} parent=1 // pred_check
      _
    $region31: #{tpu_custom_call.1} parent=1 // pred_check_branch
      %904 = sbr.rel (0) target = $region33
    $region32: #{tpu_custom_call.1} parent=1 // pred_region
      %s906 = ssub.s32 4096, 4096
      %907 = vsyncadd [#allocation4], %s906
      %s908 = sshll.u32 [#allocation7], 4
      %s909 = int_to_ptr.vmem [resolvable:$true] %s908
      %914 = dma.vmem_to_hbm [thread:$0]  %s909, 4096, %s3, [#allocation4], 128, 128, 8
    $region33: #{tpu_custom_call.1} parent=1 // pred_fallthru
      _
    // Predicated region
    $region34: #{tpu_custom_call.1} parent=1 // pred_check
      _
    $region35: #{tpu_custom_call.1} parent=1 // pred_check_branch
      %916 = sbr.rel (0) target = $region37
    $region36: #{tpu_custom_call.1} parent=1 // pred_region
      _
    $region37: #{tpu_custom_call.1} parent=1 // pred_fallthru
      _
    // Predicated region
    $region38: #{tpu_custom_call.1} parent=1 // pred_check
      _
    $region39: #{tpu_custom_call.1} parent=1 // pred_check_branch
      %918 = sbr.rel (0) target = $region41
    $region40: #{tpu_custom_call.1} parent=1 // pred_region
      %919 = dma.done [#allocation4], 4096
    $region41: #{tpu_custom_call.1} parent=1 // pred_fallthru
      _
    // Predicated region
    $region42: #{tpu_custom_call.1} parent=1 // pred_check
      _
    $region43: #{tpu_custom_call.1} parent=1 // pred_check_branch
      %921 = sbr.rel (0) target = $region45
    $region44: #{tpu_custom_call.1} parent=1 // pred_region
      _
    $region45: #{tpu_custom_call.1} parent=1 // pred_fallthru
      _
    %922 = vsyncpa [#allocation3], 1
    %923 = vsyncpa [#allocation6], 1
    %924 = vsyncpa [#allocation4], 1

</llo_original>
